<compile_context>
chip_gen: v7x
topology: tpu7x:2x2x1
jax: 0.10.0
libtpu: 0.0.40
codegen_flags: <defaults>
</compile_context>

<pallas_src>
import jax
import jax.numpy as jnp
from jax.experimental import pallas as pl
from jax.experimental.pallas import tpu as pltpu

# MLP dims from the PyTorch module.
IN_F, H1, H2, OUT_F = 956, 50, 8, 1


def _round_up(x, m):
    return ((x + m - 1) // m) * m


H1_P = _round_up(H1, 128)      # 128
H2_P = _round_up(H2, 128)      # 128
OUT_P = _round_up(OUT_F, 128)  # 128  (padded matmul width; output itself is narrow)

# Max batch-tile rows.  bf16 x at TB=2048: ~7.5 MiB double-buffered x +
# <1 MiB resident weights + ~3 MiB f32 intermediates -> well inside 48 MiB.
TB_MAX = 2048


def mlp_kernel(x_ref, w1_ref, b1_ref, w2_ref, b2_ref, w3_ref, b3_ref, o_ref):
    """One batch tile: (matmul+bias+ReLU) x2, then matmul+bias+sigmoid."""
    x = x_ref[...]                                   # already cast in the wrapper
    h1 = jnp.dot(x, w1_ref[...], preferred_element_type=jnp.float32) + b1_ref[...]
    h1 = jnp.maximum(h1, 0.0)
    h2 = (jnp.dot(h1.astype(w2_ref.dtype), w2_ref[...],
                  preferred_element_type=jnp.float32) + b2_ref[...])
    h2 = jnp.maximum(h2, 0.0)
    h3 = (jnp.dot(h2.astype(w3_ref.dtype), w3_ref[...],
                  preferred_element_type=jnp.float32) + b3_ref[...])
    # Only the first (real) output column is written back: (tb, 1) store.
    o_ref[...] = jax.nn.sigmoid(h3[:, :OUT_F]).astype(o_ref.dtype)


def prepare_params(w1, b1, w2, b2, w3, b3, dtype=jnp.bfloat16):
    """Pad weights/biases ONCE (hoisted out of the forward path).

    Production default is bf16 weights (halves weight/x HBM traffic, hits the
    bf16 MXU path on all chips); pass dtype=jnp.float32 for exact f32 semantics.
    Biases stay f32 since they are added to the f32 accumulator.  Zero padding
    is inert through linear+ReLU and the padded sigmoid lanes are never stored."""
    w1p = jnp.zeros((IN_F, H1_P), dtype).at[:, :H1].set(w1.astype(dtype))
    b1p = jnp.zeros((1, H1_P), jnp.float32).at[0, :H1].set(b1)
    w2p = jnp.zeros((H1_P, H2_P), dtype).at[:H1, :H2].set(w2.astype(dtype))
    b2p = jnp.zeros((1, H2_P), jnp.float32).at[0, :H2].set(b2)
    w3p = jnp.zeros((H2_P, OUT_P), dtype).at[:H2, :OUT_F].set(w3.astype(dtype))
    b3p = jnp.zeros((1, OUT_P), jnp.float32).at[0, :OUT_F].set(b3)
    return w1p, b1p, w2p, b2p, w3p, b3p


def _batch_tile(B):
    """Pick the batch tile; guarantee >=2 grid steps whenever possible so the
    'parallel' axis shards across both v7x TensorCores and x DMA pipelines."""
    if B > TB_MAX:
        return TB_MAX
    if B <= 8:
        return B                       # single full-array block (can't split <8 rows)
    return min(_round_up(-(-B // 2), 8), B)


@jax.jit
def mlp_forward(x, w1p, b1p, w2p, b2p, w3p, b3p):
    """x: (B, 956) unpadded.  w*/b* already padded via prepare_params."""
    B = x.shape[0]
    # Cast in the wrapper (not the kernel): bf16 x halves HBM traffic on the
    # binding resource when using the default bf16 weights.
    x = x.astype(w1p.dtype)

    tb = _batch_tile(B)
    grid = (pl.cdiv(B, tb),)

    nbytes = lambda a: a.size * a.dtype.itemsize
    cost = pl.CostEstimate(
        flops=2 * B * (IN_F * H1_P + H1_P * H2_P + H2_P * OUT_P),
        transcendentals=B * OUT_F,
        bytes_accessed=(nbytes(x)
                        + nbytes(w1p) + nbytes(b1p)
                        + nbytes(w2p) + nbytes(b2p)
                        + nbytes(w3p) + nbytes(b3p)
                        + B * OUT_F * 4),
    )

    const = lambda shape: pl.BlockSpec(shape, lambda i: (0, 0))  # VMEM-resident

    out = pl.pallas_call(
        mlp_kernel,
        out_shape=jax.ShapeDtypeStruct((B, OUT_F), jnp.float32),
        grid=grid,
        in_specs=[
            # x tile: feature dim equals full array dim (956) -> no x padding.
            pl.BlockSpec((tb, IN_F), lambda i: (i, 0)),
            const((IN_F, H1_P)), const((1, H1_P)),
            const((H1_P, H2_P)), const((1, H2_P)),
            const((H2_P, OUT_P)), const((1, OUT_P)),
        ],
        # Narrow output: last block dim (1) equals the full array dim -> legal;
        # avoids the 128-wide padded writeback and the external slice op.
        out_specs=pl.BlockSpec((tb, OUT_F), lambda i: (i, 0)),
        compiler_params=pltpu.CompilerParams(
            dimension_semantics=("parallel",),
            vmem_limit_bytes=48 * 1024 * 1024,
        ),
        cost_estimate=cost,
    )(x, w1p, b1p, w2p, b2p, w3p, b3p)
    return out


def init_params(key):
    """PyTorch-Linear-style init (uniform +-1/sqrt(fan_in)); W is (in, out)."""
    def linear(k, fan_in, fan_out):
        kw, kb = jax.random.split(k)
        bound = 1.0 / jnp.sqrt(fan_in)
        w = jax.random.uniform(kw, (fan_in, fan_out), jnp.float32, -bound, bound)
        b = jax.random.uniform(kb, (fan_out,), jnp.float32, -bound, bound)
        return w, b

    k1, k2, k3 = jax.random.split(key, 3)
    w1, b1 = linear(k1, IN_F, H1)
    w2, b2 = linear(k2, H1, H2)
    w3, b3 = linear(k3, H2, OUT_F)
    return w1, b1, w2, b2, w3, b3


def reference_forward(x, w1, b1, w2, b2, w3, b3):
    h1 = jnp.maximum(x @ w1 + b1, 0.0)
    h2 = jnp.maximum(h1 @ w2 + b2, 0.0)
    return jax.nn.sigmoid(h2 @ w3 + b3)


if __name__ == "__main__":
    key = jax.random.PRNGKey(0)
    k_params, k_x, k_x2 = jax.random.split(key, 3)

    raw_params = init_params(k_params)

    # --- exact f32 path (bit-level semantics of the original module) ---------
    padded_f32 = prepare_params(*raw_params, dtype=jnp.float32)

    B = 8
    x = jax.random.normal(k_x, (B, IN_F), jnp.float32)
    out = jax.block_until_ready(mlp_forward(x, *padded_f32))
    ref = reference_forward(x, *raw_params)
    assert out.shape == (B, OUT_F), out.shape
    assert jnp.allclose(out, ref, atol=1e-5, rtol=1e-5), (
        float(jnp.max(jnp.abs(out - ref))))

    # Exercise the multi-step batch grid (tb=32 -> grid=(2,)), still small.
    B2 = 64
    x2 = jax.random.normal(k_x2, (B2, IN_F), jnp.float32)
    out2 = jax.block_until_ready(mlp_forward(x2, *padded_f32))
    ref2 = reference_forward(x2, *raw_params)
    assert out2.shape == (B2, OUT_F)
    assert jnp.allclose(out2, ref2, atol=1e-5, rtol=1e-5), (
        float(jnp.max(jnp.abs(out2 - ref2))))

    # --- production default: bf16 weights + bf16 x (f32 accumulation) --------
    padded_bf16 = prepare_params(*raw_params)          # dtype defaults to bf16
    out_bf16 = jax.block_until_ready(mlp_forward(x, *padded_bf16))
    assert out_bf16.shape == (B, OUT_F)
    assert jnp.allclose(out_bf16, ref, atol=5e-2), (
        float(jnp.max(jnp.abs(out_bf16 - ref))))

    print("KERNEL_OK")
</pallas_src>

<mosaic_0001>
module attributes {stable_mosaic.version = 11 : i64} {
  func.func @mlp_kernel(%arg0: i32, %arg1: memref<8x956xf32, #tpu.memory_space<vmem>>, %arg2: memref<956x128xf32, #tpu.memory_space<vmem>>, %arg3: memref<1x128xf32, #tpu.memory_space<vmem>>, %arg4: memref<128x128xf32, #tpu.memory_space<vmem>>, %arg5: memref<1x128xf32, #tpu.memory_space<vmem>>, %arg6: memref<128x128xf32, #tpu.memory_space<vmem>>, %arg7: memref<1x128xf32, #tpu.memory_space<vmem>>, %arg8: memref<8x1xf32, #tpu.memory_space<vmem>>) attributes {dimension_semantics = [#tpu.dimension_semantics<parallel>], iteration_bounds = array<i64: 1>, scalar_prefetch = 0 : i64, scratch_operands = 0 : i64, tpu.core_type = #tpu.core_type<tc>, window_params = [{transform_indices = @transform_0, window_bounds = array<i64: 8, 956>}, {pipeline_mode = #tpu.pipeline_mode<synchronous>, transform_indices = @transform_1, window_bounds = array<i64: 956, 128>}, {pipeline_mode = #tpu.pipeline_mode<synchronous>, transform_indices = @transform_2, window_bounds = array<i64: 1, 128>}, {pipeline_mode = #tpu.pipeline_mode<synchronous>, transform_indices = @transform_3, window_bounds = array<i64: 128, 128>}, {pipeline_mode = #tpu.pipeline_mode<synchronous>, transform_indices = @transform_4, window_bounds = array<i64: 1, 128>}, {pipeline_mode = #tpu.pipeline_mode<synchronous>, transform_indices = @transform_5, window_bounds = array<i64: 128, 128>}, {pipeline_mode = #tpu.pipeline_mode<synchronous>, transform_indices = @transform_6, window_bounds = array<i64: 1, 128>}, {transform_indices = @transform_7, window_bounds = array<i64: 8, 1>}]} {
    %c0 = arith.constant 0 : index
    %c0_0 = arith.constant 0 : index
    %0 = vector.load %arg1[%c0, %c0_0] : memref<8x956xf32, #tpu.memory_space<vmem>>, vector<8x956xf32>
    %c0_1 = arith.constant 0 : index
    %c0_2 = arith.constant 0 : index
    %1 = vector.load %arg2[%c0_1, %c0_2] : memref<956x128xf32, #tpu.memory_space<vmem>>, vector<956x128xf32>
    %cst = arith.constant dense<0.000000e+00> : vector<8x128xf32>
    %2 = tpu.matmul %0, %1, %cst {dimension_numbers = #tpu.dot_dimension_numbers<[1], [0], [0], [1], [0, 0, 1, 1], [], []>} : vector<8x956xf32>, vector<956x128xf32>, vector<8x128xf32> -> vector<8x128xf32>
    %c0_3 = arith.constant 0 : index
    %c0_4 = arith.constant 0 : index
    %3 = vector.load %arg3[%c0_3, %c0_4] : memref<1x128xf32, #tpu.memory_space<vmem>>, vector<1x128xf32>
    %4 = vector.broadcast %3 : vector<1x128xf32> to vector<8x128xf32>
    %5 = arith.addf %2, %4 : vector<8x128xf32>
    %cst_5 = arith.constant 0.000000e+00 : f32
    %6 = vector.broadcast %cst_5 : f32 to vector<8x128xf32>
    %7 = arith.maximumf %5, %6 : vector<8x128xf32>
    %c0_6 = arith.constant 0 : index
    %c0_7 = arith.constant 0 : index
    %8 = vector.load %arg4[%c0_6, %c0_7] : memref<128x128xf32, #tpu.memory_space<vmem>>, vector<128x128xf32>
    %cst_8 = arith.constant dense<0.000000e+00> : vector<8x128xf32>
    %9 = tpu.matmul %7, %8, %cst_8 {dimension_numbers = #tpu.dot_dimension_numbers<[1], [0], [0], [1], [0, 0, 1, 1], [], []>} : vector<8x128xf32>, vector<128x128xf32>, vector<8x128xf32> -> vector<8x128xf32>
    %c0_9 = arith.constant 0 : index
    %c0_10 = arith.constant 0 : index
    %10 = vector.load %arg5[%c0_9, %c0_10] : memref<1x128xf32, #tpu.memory_space<vmem>>, vector<1x128xf32>
    %11 = vector.broadcast %10 : vector<1x128xf32> to vector<8x128xf32>
    %12 = arith.addf %9, %11 : vector<8x128xf32>
    %cst_11 = arith.constant 0.000000e+00 : f32
    %13 = vector.broadcast %cst_11 : f32 to vector<8x128xf32>
    %14 = arith.maximumf %12, %13 : vector<8x128xf32>
    %c0_12 = arith.constant 0 : index
    %c0_13 = arith.constant 0 : index
    %15 = vector.load %arg6[%c0_12, %c0_13] : memref<128x128xf32, #tpu.memory_space<vmem>>, vector<128x128xf32>
    %cst_14 = arith.constant dense<0.000000e+00> : vector<8x128xf32>
    %16 = tpu.matmul %14, %15, %cst_14 {dimension_numbers = #tpu.dot_dimension_numbers<[1], [0], [0], [1], [0, 0, 1, 1], [], []>} : vector<8x128xf32>, vector<128x128xf32>, vector<8x128xf32> -> vector<8x128xf32>
    %c0_15 = arith.constant 0 : index
    %c0_16 = arith.constant 0 : index
    %17 = vector.load %arg7[%c0_15, %c0_16] : memref<1x128xf32, #tpu.memory_space<vmem>>, vector<1x128xf32>
    %18 = vector.broadcast %17 : vector<1x128xf32> to vector<8x128xf32>
    %19 = arith.addf %16, %18 : vector<8x128xf32>
    %20 = vector.extract_strided_slice %19 {offsets = [0, 0], sizes = [8, 1], strides = [1, 1]} : vector<8x128xf32> to vector<8x1xf32>
    %21 = arith.negf %20 : vector<8x1xf32>
    %22 = math.exp %21 : vector<8x1xf32>
    %cst_17 = arith.constant 1.000000e+00 : f32
    %23 = vector.broadcast %cst_17 : f32 to vector<8x1xf32>
    %24 = arith.addf %23, %22 : vector<8x1xf32>
    %25 = arith.divf %23, %24 : vector<8x1xf32>
    %c0_18 = arith.constant 0 : index
    %c0_19 = arith.constant 0 : index
    %26 = vector.load %arg8[%c0_18, %c0_19] : memref<8x1xf32, #tpu.memory_space<vmem>>, vector<8x1xf32>
    tpu.vector_store %arg8[%c0_18, %c0_19], %25 {strides = array<i32>} : memref<8x1xf32, #tpu.memory_space<vmem>>, vector<8x1xf32>,
    return
  }
  func.func @transform_0(%arg0: i32) -> (i32, i32) {
    %c0_i32 = arith.constant 0 : i32
    %c0_i32_0 = arith.constant 0 : i32
    return %arg0, %c0_i32 : i32, i32
  }
  func.func @transform_1(%arg0: i32) -> (i32, i32) {
    %c0_i32 = arith.constant 0 : i32
    %c0_i32_0 = arith.constant 0 : i32
    %c0_i32_1 = arith.constant 0 : i32
    return %c0_i32, %c0_i32_0 : i32, i32
  }
  func.func @transform_2(%arg0: i32) -> (i32, i32) {
    %c0_i32 = arith.constant 0 : i32
    %c0_i32_0 = arith.constant 0 : i32
    %c0_i32_1 = arith.constant 0 : i32
    return %c0_i32, %c0_i32_0 : i32, i32
  }
  func.func @transform_3(%arg0: i32) -> (i32, i32) {
    %c0_i32 = arith.constant 0 : i32
    %c0_i32_0 = arith.constant 0 : i32
    %c0_i32_1 = arith.constant 0 : i32
    return %c0_i32, %c0_i32_0 : i32, i32
  }
  func.func @transform_4(%arg0: i32) -> (i32, i32) {
    %c0_i32 = arith.constant 0 : i32
    %c0_i32_0 = arith.constant 0 : i32
    %c0_i32_1 = arith.constant 0 : i32
    return %c0_i32, %c0_i32_0 : i32, i32
  }
  func.func @transform_5(%arg0: i32) -> (i32, i32) {
    %c0_i32 = arith.constant 0 : i32
    %c0_i32_0 = arith.constant 0 : i32
    %c0_i32_1 = arith.constant 0 : i32
    return %c0_i32, %c0_i32_0 : i32, i32
  }
  func.func @transform_6(%arg0: i32) -> (i32, i32) {
    %c0_i32 = arith.constant 0 : i32
    %c0_i32_0 = arith.constant 0 : i32
    %c0_i32_1 = arith.constant 0 : i32
    return %c0_i32, %c0_i32_0 : i32, i32
  }
  func.func @transform_7(%arg0: i32) -> (i32, i32) {
    %c0_i32 = arith.constant 0 : i32
    %c0_i32_0 = arith.constant 0 : i32
    return %arg0, %c0_i32 : i32, i32
  }
}

</mosaic_0001>

<llo_original>
// kernel: mlp_forward.1
$region0: #{mlp_forward.1}
  #allocation0 [shape = 'u32[]', space=smem, size = 0x4, offset = 0x4, fixed_abs, tag = 'smem constant byte address 0x4 - core index']
  #allocation1 [shape = 'u32[144,128]{1,0:T(1,128)}', space=vmem, size = 0x12000, scoped, tag = 'internal scratch']
  %s0 = inlined_call_operand.hbm [shape: f32[8,956], index: 0, kind: input, shape index: {}]
  %s1 = inlined_call_operand.hbm [shape: f32[956,128], index: 1, kind: input, shape index: {}]
  %s2 = inlined_call_operand.vmem [shape: f32[1,128], index: 2, kind: input, shape index: {}]
  %s3 = inlined_call_operand.hbm [shape: f32[128,128], index: 3, kind: input, shape index: {}]
  %s4 = inlined_call_operand.vmem [shape: f32[1,128], index: 4, kind: input, shape index: {}]
  %s5 = inlined_call_operand.hbm [shape: f32[128,128], index: 5, kind: input, shape index: {}]
  %s6 = inlined_call_operand.vmem [shape: f32[1,128], index: 6, kind: input, shape index: {}]
  %s7 = inlined_call_operand.vmem [shape: f32[8,1], index: 7, kind: output, shape index: {}]
  %s8 = sld [smem:[#allocation0]]
  $region54: #{mlp_forward.1} parent=0
    _
  %s10 = ssub.s32 1, %s8
  %s11 = scalar_select 0, %s10, %s8
  $region1: #{mlp_forward.1} parent=0
    #allocation2 [shape = 'u8[32768]{0}', space=vmem, size = 0x8000, scoped, tag = 'input window, operand 0, single buffered']
    #allocation3 [shape = 's32[1]{0}', space=sflag, size = 0x4, scoped, tag = 'scoped memory for mlp_forward.1']
    #allocation4 [shape = 'u8[491520]{0}', space=vmem, size = 0x78000, scoped, tag = 'input window, operand 1, single buffered']
    #allocation5 [shape = 's32[1]{0}', space=sflag, size = 0x4, scoped, tag = 'scoped memory for mlp_forward.1']
    #allocation6 [shape = 'u8[65536]{0}', space=vmem, size = 0x10000, scoped, tag = 'input window, operand 3, single buffered']
    #allocation7 [shape = 'u8[65536]{0}', space=vmem, size = 0x10000, scoped, tag = 'input window, operand 5, single buffered']
    #allocation8 [shape = 's32[1]{0}', space=sflag, size = 0x4, scoped, tag = 'scoped memory for mlp_forward.1']
    %12 = vsyncpa [#allocation3], 0
    %13 = vsyncpa [#allocation5], 0
    %14 = vsyncpa [#allocation8], 0
    // Predicated region
    $region2: #{mlp_forward.1} parent=1 // pred_check
      _
    $region3: #{mlp_forward.1} parent=1 // pred_check_branch
      %16 = sbr.rel (0) target = $region5
    $region4: #{mlp_forward.1} parent=1 // pred_region
      %s18 = ssub.s32 1024, 1024
      %19 = vsyncadd [#allocation3], %s18
      %s21 = sshll.u32 [#allocation2], 4
      %s22 = int_to_ptr.vmem [resolvable:$true] %s21
      %24 = dma.hbm_to_vmem [thread:$0]  %s0, 1024, %s22, [#allocation3]
    $region5: #{mlp_forward.1} parent=1 // pred_fallthru
      _
    // Predicated region
    $region6: #{mlp_forward.1} parent=1 // pred_check
      _
    $region7: #{mlp_forward.1} parent=1 // pred_check_branch
      %26 = sbr.rel (0) target = $region9
    $region8: #{mlp_forward.1} parent=1 // pred_region
      %s28 = ssub.s32 15360, 15360
      %29 = vsyncadd [#allocation5], %s28
      %s30 = sshll.u32 [#allocation4], 4
      %s31 = int_to_ptr.vmem [resolvable:$true] %s30
      %36 = dma.hbm_to_vmem [thread:$0]  %s1, 15360, %s31, [#allocation5], 128, 128, 8
    $region9: #{mlp_forward.1} parent=1 // pred_fallthru
      _
    // Predicated region
    $region10: #{mlp_forward.1} parent=1 // pred_check
      _
    $region11: #{mlp_forward.1} parent=1 // pred_check_branch
      %38 = sbr.rel (0) target = $region13
    $region12: #{mlp_forward.1} parent=1 // pred_region
      _
    $region13: #{mlp_forward.1} parent=1 // pred_fallthru
      _
    // Predicated region
    $region14: #{mlp_forward.1} parent=1 // pred_check
      _
    $region15: #{mlp_forward.1} parent=1 // pred_check_branch
      %40 = sbr.rel (0) target = $region17
    $region16: #{mlp_forward.1} parent=1 // pred_region
      %s42 = ssub.s32 2048, 2048
      %43 = vsyncadd [#allocation5], %s42
      %s44 = sshll.u32 [#allocation6], 4
      %s45 = int_to_ptr.vmem [resolvable:$true] %s44
      %50 = dma.hbm_to_vmem [thread:$0]  %s3, 2048, %s45, [#allocation5], 128, 128, 8
    $region17: #{mlp_forward.1} parent=1 // pred_fallthru
      _
    // Predicated region
    $region18: #{mlp_forward.1} parent=1 // pred_check
      _
    $region19: #{mlp_forward.1} parent=1 // pred_check_branch
      %52 = sbr.rel (0) target = $region21
    $region20: #{mlp_forward.1} parent=1 // pred_region
      _
    $region21: #{mlp_forward.1} parent=1 // pred_fallthru
      _
    // Predicated region
    $region22: #{mlp_forward.1} parent=1 // pred_check
      _
    $region23: #{mlp_forward.1} parent=1 // pred_check_branch
      %54 = sbr.rel (0) target = $region25
    $region24: #{mlp_forward.1} parent=1 // pred_region
      %s56 = ssub.s32 2048, 2048
      %57 = vsyncadd [#allocation8], %s56
      %s58 = sshll.u32 [#allocation7], 4
      %s59 = int_to_ptr.vmem [resolvable:$true] %s58
      %64 = dma.hbm_to_vmem [thread:$0]  %s5, 2048, %s59, [#allocation8], 128, 128, 8
    $region25: #{mlp_forward.1} parent=1 // pred_fallthru
      _
    // Predicated region
    $region26: #{mlp_forward.1} parent=1 // pred_check
      _
    $region27: #{mlp_forward.1} parent=1 // pred_check_branch
      %66 = sbr.rel (0) target = $region29
    $region28: #{mlp_forward.1} parent=1 // pred_region
      _
    $region29: #{mlp_forward.1} parent=1 // pred_fallthru
      _
    // Predicated region
    $region30: #{mlp_forward.1} parent=1 // pred_check
      _
    $region31: #{mlp_forward.1} parent=1 // pred_check_branch
      %68 = sbr.rel (0) target = $region33
    $region32: #{mlp_forward.1} parent=1 // pred_region
      %69 = dma.done [#allocation3], 1024
    $region33: #{mlp_forward.1} parent=1 // pred_fallthru
      _
    // Predicated region
    $region34: #{mlp_forward.1} parent=1 // pred_check
      _
    $region35: #{mlp_forward.1} parent=1 // pred_check_branch
      %71 = sbr.rel (0) target = $region37
    $region36: #{mlp_forward.1} parent=1 // pred_region
      %72 = dma.done [#allocation5], 15360
    $region37: #{mlp_forward.1} parent=1 // pred_fallthru
      _
    // Predicated region
    $region38: #{mlp_forward.1} parent=1 // pred_check
      _
    $region39: #{mlp_forward.1} parent=1 // pred_check_branch
      %74 = sbr.rel (0) target = $region41
    $region40: #{mlp_forward.1} parent=1 // pred_region
      %75 = dma.done [#allocation5], 2048
    $region41: #{mlp_forward.1} parent=1 // pred_fallthru
      _
    // Predicated region
    $region42: #{mlp_forward.1} parent=1 // pred_check
      _
    $region43: #{mlp_forward.1} parent=1 // pred_check_branch
      %77 = sbr.rel (0) target = $region45
    $region44: #{mlp_forward.1} parent=1 // pred_region
      %78 = dma.done [#allocation8], 2048
    $region45: #{mlp_forward.1} parent=1 // pred_fallthru
      _
    %v79 = vld [vmem:[#allocation2] sm:$0xff]
    %v80 = vld [vmem:[#allocation2 + $0x8] sm:$0xff]
    %v81 = vld [vmem:[#allocation2 + $0x10] sm:$0xff]
    %v82 = vld [vmem:[#allocation2 + $0x18] sm:$0xff]
    %v83 = vld [vmem:[#allocation2 + $0x20] sm:$0xff]
    %v84 = vld [vmem:[#allocation2 + $0x28] sm:$0xff]
    %v85 = vld [vmem:[#allocation2 + $0x30] sm:$0xff]
    %v86 = vld [vmem:[#allocation2 + $0x38] sm:$0xff]
    %v87 = vld [vmem:[#allocation4] sm:$0xff]
    %v88 = vld [vmem:[#allocation4 + $0x8] sm:$0xff]
    %v89 = vld [vmem:[#allocation4 + $0x10] sm:$0xff]
    %v90 = vld [vmem:[#allocation4 + $0x18] sm:$0xff]
    %v91 = vld [vmem:[#allocation4 + $0x20] sm:$0xff]
    %v92 = vld [vmem:[#allocation4 + $0x28] sm:$0xff]
    %v93 = vld [vmem:[#allocation4 + $0x30] sm:$0xff]
    %v94 = vld [vmem:[#allocation4 + $0x38] sm:$0xff]
    %v95 = vld [vmem:[#allocation4 + $0x40] sm:$0xff]
    %v96 = vld [vmem:[#allocation4 + $0x48] sm:$0xff]
    %v97 = vld [vmem:[#allocation4 + $0x50] sm:$0xff]
    %v98 = vld [vmem:[#allocation4 + $0x58] sm:$0xff]
    %v99 = vld [vmem:[#allocation4 + $0x60] sm:$0xff]
    %v100 = vld [vmem:[#allocation4 + $0x68] sm:$0xff]
    %v101 = vld [vmem:[#allocation4 + $0x70] sm:$0xff]
    %v102 = vld [vmem:[#allocation4 + $0x78] sm:$0xff]
    %v103 = vld [vmem:[#allocation4 + $0x80] sm:$0xff]
    %v104 = vld [vmem:[#allocation4 + $0x88] sm:$0xff]
    %v105 = vld [vmem:[#allocation4 + $0x90] sm:$0xff]
    %v106 = vld [vmem:[#allocation4 + $0x98] sm:$0xff]
    %v107 = vld [vmem:[#allocation4 + $0xa0] sm:$0xff]
    %v108 = vld [vmem:[#allocation4 + $0xa8] sm:$0xff]
    %v109 = vld [vmem:[#allocation4 + $0xb0] sm:$0xff]
    %v110 = vld [vmem:[#allocation4 + $0xb8] sm:$0xff]
    %v111 = vld [vmem:[#allocation4 + $0xc0] sm:$0xff]
    %v112 = vld [vmem:[#allocation4 + $0xc8] sm:$0xff]
    %v113 = vld [vmem:[#allocation4 + $0xd0] sm:$0xff]
    %v114 = vld [vmem:[#allocation4 + $0xd8] sm:$0xff]
    %v115 = vld [vmem:[#allocation4 + $0xe0] sm:$0xff]
    %v116 = vld [vmem:[#allocation4 + $0xe8] sm:$0xff]
    %v117 = vld [vmem:[#allocation4 + $0xf0] sm:$0xff]
    %v118 = vld [vmem:[#allocation4 + $0xf8] sm:$0xff]
    %v119 = vld [vmem:[#allocation4 + $0x100] sm:$0xff]
    %v120 = vld [vmem:[#allocation4 + $0x108] sm:$0xff]
    %v121 = vld [vmem:[#allocation4 + $0x110] sm:$0xff]
    %v122 = vld [vmem:[#allocation4 + $0x118] sm:$0xff]
    %v123 = vld [vmem:[#allocation4 + $0x120] sm:$0xff]
    %v124 = vld [vmem:[#allocation4 + $0x128] sm:$0xff]
    %v125 = vld [vmem:[#allocation4 + $0x130] sm:$0xff]
    %v126 = vld [vmem:[#allocation4 + $0x138] sm:$0xff]
    %v127 = vld [vmem:[#allocation4 + $0x140] sm:$0xff]
    %v128 = vld [vmem:[#allocation4 + $0x148] sm:$0xff]
    %v129 = vld [vmem:[#allocation4 + $0x150] sm:$0xff]
    %v130 = vld [vmem:[#allocation4 + $0x158] sm:$0xff]
    %v131 = vld [vmem:[#allocation4 + $0x160] sm:$0xff]
    %v132 = vld [vmem:[#allocation4 + $0x168] sm:$0xff]
    %v133 = vld [vmem:[#allocation4 + $0x170] sm:$0xff]
    %v134 = vld [vmem:[#allocation4 + $0x178] sm:$0xff]
    %v135 = vld [vmem:[#allocation4 + $0x180] sm:$0xff]
    %v136 = vld [vmem:[#allocation4 + $0x188] sm:$0xff]
    %v137 = vld [vmem:[#allocation4 + $0x190] sm:$0xff]
    %v138 = vld [vmem:[#allocation4 + $0x198] sm:$0xff]
    %v139 = vld [vmem:[#allocation4 + $0x1a0] sm:$0xff]
    %v140 = vld [vmem:[#allocation4 + $0x1a8] sm:$0xff]
    %v141 = vld [vmem:[#allocation4 + $0x1b0] sm:$0xff]
    %v142 = vld [vmem:[#allocation4 + $0x1b8] sm:$0xff]
    %v143 = vld [vmem:[#allocation4 + $0x1c0] sm:$0xff]
    %v144 = vld [vmem:[#allocation4 + $0x1c8] sm:$0xff]
    %v145 = vld [vmem:[#allocation4 + $0x1d0] sm:$0xff]
    %v146 = vld [vmem:[#allocation4 + $0x1d8] sm:$0xff]
    %v147 = vld [vmem:[#allocation4 + $0x1e0] sm:$0xff]
    %v148 = vld [vmem:[#allocation4 + $0x1e8] sm:$0xff]
    %v149 = vld [vmem:[#allocation4 + $0x1f0] sm:$0xff]
    %v150 = vld [vmem:[#allocation4 + $0x1f8] sm:$0xff]
    %v151 = vld [vmem:[#allocation4 + $0x200] sm:$0xff]
    %v152 = vld [vmem:[#allocation4 + $0x208] sm:$0xff]
    %v153 = vld [vmem:[#allocation4 + $0x210] sm:$0xff]
    %v154 = vld [vmem:[#allocation4 + $0x218] sm:$0xff]
    %v155 = vld [vmem:[#allocation4 + $0x220] sm:$0xff]
    %v156 = vld [vmem:[#allocation4 + $0x228] sm:$0xff]
    %v157 = vld [vmem:[#allocation4 + $0x230] sm:$0xff]
    %v158 = vld [vmem:[#allocation4 + $0x238] sm:$0xff]
    %v159 = vld [vmem:[#allocation4 + $0x240] sm:$0xff]
    %v160 = vld [vmem:[#allocation4 + $0x248] sm:$0xff]
    %v161 = vld [vmem:[#allocation4 + $0x250] sm:$0xff]
    %v162 = vld [vmem:[#allocation4 + $0x258] sm:$0xff]
    %v163 = vld [vmem:[#allocation4 + $0x260] sm:$0xff]
    %v164 = vld [vmem:[#allocation4 + $0x268] sm:$0xff]
    %v165 = vld [vmem:[#allocation4 + $0x270] sm:$0xff]
    %v166 = vld [vmem:[#allocation4 + $0x278] sm:$0xff]
    %v167 = vld [vmem:[#allocation4 + $0x280] sm:$0xff]
    %v168 = vld [vmem:[#allocation4 + $0x288] sm:$0xff]
    %v169 = vld [vmem:[#allocation4 + $0x290] sm:$0xff]
    %v170 = vld [vmem:[#allocation4 + $0x298] sm:$0xff]
    %v171 = vld [vmem:[#allocation4 + $0x2a0] sm:$0xff]
    %v172 = vld [vmem:[#allocation4 + $0x2a8] sm:$0xff]
    %v173 = vld [vmem:[#allocation4 + $0x2b0] sm:$0xff]
    %v174 = vld [vmem:[#allocation4 + $0x2b8] sm:$0xff]
    %v175 = vld [vmem:[#allocation4 + $0x2c0] sm:$0xff]
    %v176 = vld [vmem:[#allocation4 + $0x2c8] sm:$0xff]
    %v177 = vld [vmem:[#allocation4 + $0x2d0] sm:$0xff]
    %v178 = vld [vmem:[#allocation4 + $0x2d8] sm:$0xff]
    %v179 = vld [vmem:[#allocation4 + $0x2e0] sm:$0xff]
    %v180 = vld [vmem:[#allocation4 + $0x2e8] sm:$0xff]
    %v181 = vld [vmem:[#allocation4 + $0x2f0] sm:$0xff]
    %v182 = vld [vmem:[#allocation4 + $0x2f8] sm:$0xff]
    %v183 = vld [vmem:[#allocation4 + $0x300] sm:$0xff]
    %v184 = vld [vmem:[#allocation4 + $0x308] sm:$0xff]
    %v185 = vld [vmem:[#allocation4 + $0x310] sm:$0xff]
    %v186 = vld [vmem:[#allocation4 + $0x318] sm:$0xff]
    %v187 = vld [vmem:[#allocation4 + $0x320] sm:$0xff]
    %v188 = vld [vmem:[#allocation4 + $0x328] sm:$0xff]
    %v189 = vld [vmem:[#allocation4 + $0x330] sm:$0xff]
    %v190 = vld [vmem:[#allocation4 + $0x338] sm:$0xff]
    %v191 = vld [vmem:[#allocation4 + $0x340] sm:$0xff]
    %v192 = vld [vmem:[#allocation4 + $0x348] sm:$0xff]
    %v193 = vld [vmem:[#allocation4 + $0x350] sm:$0xff]
    %v194 = vld [vmem:[#allocation4 + $0x358] sm:$0xff]
    %v195 = vld [vmem:[#allocation4 + $0x360] sm:$0xff]
    %v196 = vld [vmem:[#allocation4 + $0x368] sm:$0xff]
    %v197 = vld [vmem:[#allocation4 + $0x370] sm:$0xff]
    %v198 = vld [vmem:[#allocation4 + $0x378] sm:$0xff]
    %v199 = vld [vmem:[#allocation4 + $0x380] sm:$0xff]
    %v200 = vld [vmem:[#allocation4 + $0x388] sm:$0xff]
    %v201 = vld [vmem:[#allocation4 + $0x390] sm:$0xff]
    %v202 = vld [vmem:[#allocation4 + $0x398] sm:$0xff]
    %v203 = vld [vmem:[#allocation4 + $0x3a0] sm:$0xff]
    %v204 = vld [vmem:[#allocation4 + $0x3a8] sm:$0xff]
    %v205 = vld [vmem:[#allocation4 + $0x3b0] sm:$0xff]
    %v206 = vld [vmem:[#allocation4 + $0x3b8] sm:$0xf]
    %v207 = vld [vmem:[%s2] sm:$0x1]
    %v209 = vlaneseq
    %v210 = vshrl.u32 %v209, 7
    %v211 = vsub.s32 0, %v210
    %v212 = vrot.slane %v207, %v211
    %vm214 = vcmask 490496
    %v216 = vsel %vm214, %v86, 0
    %vm218 = vcmask 1043456
    %v220 = vsel %vm218, %v206, 0
    %222 = vmatprep.subr.mxu0 0.0
    %223 = vmatpush1.msra.mxu0 %v87
    %224 = vmatprep.subr.mxu0 0.0
    %225 = vmatpush1.msra.mxu0 %v88
    %226 = vmatprep.subr.mxu0 0.0
    %227 = vmatpush1.msra.mxu0 %v89
    %228 = vmatprep.subr.mxu0 0.0
    %229 = vmatpush1.msra.mxu0 %v90
    %230 = vmatprep.subr.mxu0 0.0
    %231 = vmatpush1.msra.mxu0 %v91
    %232 = vmatprep.subr.mxu0 0.0
    %233 = vmatpush1.msra.mxu0 %v92
    %234 = vmatprep.subr.mxu0 0.0
    %235 = vmatpush1.msra.mxu0 %v93
    %236 = vmatprep.subr.mxu0 0.0
    %237 = vmatpush1.msra.mxu0 %v94
    %238 = vmatprep.subr.mxu0 0.0
    %239 = vmatpush1.msra.mxu0 %v95
    %240 = vmatprep.subr.mxu0 0.0
    %241 = vmatpush1.msra.mxu0 %v96
    %242 = vmatprep.subr.mxu0 0.0
    %243 = vmatpush1.msra.mxu0 %v97
    %244 = vmatprep.subr.mxu0 0.0
    %245 = vmatpush1.msra.mxu0 %v98
    %246 = vmatprep.subr.mxu0 0.0
    %247 = vmatpush1.msra.mxu0 %v99
    %248 = vmatprep.subr.mxu0 0.0
    %249 = vmatpush1.msra.mxu0 %v100
    %250 = vmatprep.subr.mxu0 0.0
    %251 = vmatpush1.msra.mxu0 %v101
    %252 = vmatprep.subr.mxu0 0.0
    %253 = vmatpush1.msra.mxu0 %v102
    %254 = vmatprep.subr.mxu0 0.0
    %255 = vmatpush1.msra.mxu0 %v103
    %256 = vmatprep.subr.mxu0 0.0
    %257 = vmatpush1.msra.mxu0 %v104
    %258 = vmatprep.subr.mxu0 0.0
    %259 = vmatpush1.msra.mxu0 %v105
    %260 = vmatprep.subr.mxu0 0.0
    %261 = vmatpush1.msra.mxu0 %v106
    %262 = vmatprep.subr.mxu0 0.0
    %263 = vmatpush1.msra.mxu0 %v107
    %264 = vmatprep.subr.mxu0 0.0
    %265 = vmatpush1.msra.mxu0 %v108
    %266 = vmatprep.subr.mxu0 0.0
    %267 = vmatpush1.msra.mxu0 %v109
    %268 = vmatprep.subr.mxu0 0.0
    %269 = vmatpush1.msra.mxu0 %v110
    %270 = vmatprep.subr.mxu0 0.0
    %271 = vmatpush1.msra.mxu0 %v111
    %272 = vmatprep.subr.mxu0 0.0
    %273 = vmatpush1.msra.mxu0 %v112
    %274 = vmatprep.subr.mxu0 0.0
    %275 = vmatpush1.msra.mxu0 %v113
    %276 = vmatprep.subr.mxu0 0.0
    %277 = vmatpush1.msra.mxu0 %v114
    %278 = vmatprep.subr.mxu0 0.0
    %279 = vmatpush1.msra.mxu0 %v115
    %280 = vmatprep.subr.mxu0 0.0
    %281 = vmatpush1.msra.mxu0 %v116
    %282 = vmatprep.subr.mxu0 0.0
    %283 = vmatpush1.msra.mxu0 %v117
    %284 = vmatprep.subr.mxu0 0.0
    %285 = vmatpush1.msra.mxu0 %v118
    %286 = vmatprep.mubr.f32.mxu0 %v80
    %287 = vmatmul.mubr.f32.gmra.mrb[0].mxu0 %v79
    %v288 = vpop.f32.mrb[0].mxu0
    %v289 = vadd.f32 %v212, %v288
    %v290 = vpop.f32.mrb[0].mxu0
    %291 = vdwg.mxu0
    %292 = vmatprep.subr.mxu0 0.0
    %293 = vmatpush1.msra.mxu0 %v119
    %294 = vmatprep.subr.mxu0 0.0
    %295 = vmatpush1.msra.mxu0 %v120
    %296 = vmatprep.subr.mxu0 0.0
    %297 = vmatpush1.msra.mxu0 %v121
    %298 = vmatprep.subr.mxu0 0.0
    %299 = vmatpush1.msra.mxu0 %v122
    %300 = vmatprep.subr.mxu0 0.0
    %301 = vmatpush1.msra.mxu0 %v123
    %302 = vmatprep.subr.mxu0 0.0
    %303 = vmatpush1.msra.mxu0 %v124
    %304 = vmatprep.subr.mxu0 0.0
    %305 = vmatpush1.msra.mxu0 %v125
    %306 = vmatprep.subr.mxu0 0.0
    %307 = vmatpush1.msra.mxu0 %v126
    %308 = vmatprep.subr.mxu0 0.0
    %309 = vmatpush1.msra.mxu0 %v127
    %310 = vmatprep.subr.mxu0 0.0
    %311 = vmatpush1.msra.mxu0 %v128
    %312 = vmatprep.subr.mxu0 0.0
    %313 = vmatpush1.msra.mxu0 %v129
    %314 = vmatprep.subr.mxu0 0.0
    %315 = vmatpush1.msra.mxu0 %v130
    %316 = vmatprep.subr.mxu0 0.0
    %317 = vmatpush1.msra.mxu0 %v131
    %318 = vmatprep.subr.mxu0 0.0
    %319 = vmatpush1.msra.mxu0 %v132
    %320 = vmatprep.subr.mxu0 0.0
    %321 = vmatpush1.msra.mxu0 %v133
    %322 = vmatprep.subr.mxu0 0.0
    %323 = vmatpush1.msra.mxu0 %v134
    %324 = vmatprep.subr.mxu0 0.0
    %325 = vmatpush1.msra.mxu0 %v135
    %326 = vmatprep.subr.mxu0 0.0
    %327 = vmatpush1.msra.mxu0 %v136
    %328 = vmatprep.subr.mxu0 0.0
    %329 = vmatpush1.msra.mxu0 %v137
    %330 = vmatprep.subr.mxu0 0.0
    %331 = vmatpush1.msra.mxu0 %v138
    %332 = vmatprep.subr.mxu0 0.0
    %333 = vmatpush1.msra.mxu0 %v139
    %334 = vmatprep.subr.mxu0 0.0
    %335 = vmatpush1.msra.mxu0 %v140
    %336 = vmatprep.subr.mxu0 0.0
    %337 = vmatpush1.msra.mxu0 %v141
    %338 = vmatprep.subr.mxu0 0.0
    %339 = vmatpush1.msra.mxu0 %v142
    %340 = vmatprep.subr.mxu0 0.0
    %341 = vmatpush1.msra.mxu0 %v143
    %342 = vmatprep.subr.mxu0 0.0
    %343 = vmatpush1.msra.mxu0 %v144
    %344 = vmatprep.subr.mxu0 0.0
    %345 = vmatpush1.msra.mxu0 %v145
    %346 = vmatprep.subr.mxu0 0.0
    %347 = vmatpush1.msra.mxu0 %v146
    %348 = vmatprep.subr.mxu0 0.0
    %349 = vmatpush1.msra.mxu0 %v147
    %350 = vmatprep.subr.mxu0 0.0
    %351 = vmatpush1.msra.mxu0 %v148
    %352 = vmatprep.subr.mxu0 0.0
    %353 = vmatpush1.msra.mxu0 %v149
    %354 = vmatprep.subr.mxu0 0.0
    %355 = vmatpush1.msra.mxu0 %v150
    %356 = vmatprep.mubr.f32.mxu0 %v82
    %357 = vmatmul.mubr.f32.gmra.mrb[0].mxu0 %v81
    %v358 = vpop.f32.mrb[0].mxu0
    %v359 = vadd.f32 %v289, %v358
    %v360 = vpop.f32.mrb[0].mxu0
    %361 = vdwg.mxu0
    %362 = vmatprep.subr.mxu0 0.0
    %363 = vmatpush1.msra.mxu0 %v151
    %364 = vmatprep.subr.mxu0 0.0
    %365 = vmatpush1.msra.mxu0 %v152
    %366 = vmatprep.subr.mxu0 0.0
    %367 = vmatpush1.msra.mxu0 %v153
    %368 = vmatprep.subr.mxu0 0.0
    %369 = vmatpush1.msra.mxu0 %v154
    %370 = vmatprep.subr.mxu0 0.0
    %371 = vmatpush1.msra.mxu0 %v155
    %372 = vmatprep.subr.mxu0 0.0
    %373 = vmatpush1.msra.mxu0 %v156
    %374 = vmatprep.subr.mxu0 0.0
    %375 = vmatpush1.msra.mxu0 %v157
    %376 = vmatprep.subr.mxu0 0.0
    %377 = vmatpush1.msra.mxu0 %v158
    %378 = vmatprep.subr.mxu0 0.0
    %379 = vmatpush1.msra.mxu0 %v159
    %380 = vmatprep.subr.mxu0 0.0
    %381 = vmatpush1.msra.mxu0 %v160
    %382 = vmatprep.subr.mxu0 0.0
    %383 = vmatpush1.msra.mxu0 %v161
    %384 = vmatprep.subr.mxu0 0.0
    %385 = vmatpush1.msra.mxu0 %v162
    %386 = vmatprep.subr.mxu0 0.0
    %387 = vmatpush1.msra.mxu0 %v163
    %388 = vmatprep.subr.mxu0 0.0
    %389 = vmatpush1.msra.mxu0 %v164
    %390 = vmatprep.subr.mxu0 0.0
    %391 = vmatpush1.msra.mxu0 %v165
    %392 = vmatprep.subr.mxu0 0.0
    %393 = vmatpush1.msra.mxu0 %v166
    %394 = vmatprep.subr.mxu0 0.0
    %395 = vmatpush1.msra.mxu0 %v167
    %396 = vmatprep.subr.mxu0 0.0
    %397 = vmatpush1.msra.mxu0 %v168
    %398 = vmatprep.subr.mxu0 0.0
    %399 = vmatpush1.msra.mxu0 %v169
    %400 = vmatprep.subr.mxu0 0.0
    %401 = vmatpush1.msra.mxu0 %v170
    %402 = vmatprep.subr.mxu0 0.0
    %403 = vmatpush1.msra.mxu0 %v171
    %404 = vmatprep.subr.mxu0 0.0
    %405 = vmatpush1.msra.mxu0 %v172
    %406 = vmatprep.subr.mxu0 0.0
    %407 = vmatpush1.msra.mxu0 %v173
    %408 = vmatprep.subr.mxu0 0.0
    %409 = vmatpush1.msra.mxu0 %v174
    %410 = vmatprep.subr.mxu0 0.0
    %411 = vmatpush1.msra.mxu0 %v175
    %412 = vmatprep.subr.mxu0 0.0
    %413 = vmatpush1.msra.mxu0 %v176
    %414 = vmatprep.subr.mxu0 0.0
    %415 = vmatpush1.msra.mxu0 %v177
    %416 = vmatprep.subr.mxu0 0.0
    %417 = vmatpush1.msra.mxu0 %v178
    %418 = vmatprep.subr.mxu0 0.0
    %419 = vmatpush1.msra.mxu0 %v179
    %420 = vmatprep.subr.mxu0 0.0
    %421 = vmatpush1.msra.mxu0 %v180
    %422 = vmatprep.subr.mxu0 0.0
    %423 = vmatpush1.msra.mxu0 %v181
    %424 = vmatprep.subr.mxu0 0.0
    %425 = vmatpush1.msra.mxu0 %v182
    %426 = vmatprep.mubr.f32.mxu0 %v84
    %427 = vmatmul.mubr.f32.gmra.mrb[0].mxu0 %v83
    %v428 = vpop.f32.mrb[0].mxu0
    %v429 = vadd.f32 %v359, %v428
    %v430 = vpop.f32.mrb[0].mxu0
    %431 = vdwg.mxu0
    %432 = vmatprep.subr.mxu0 0.0
    %433 = vmatpush1.msra.mxu0 %v183
    %434 = vmatprep.subr.mxu0 0.0
    %435 = vmatpush1.msra.mxu0 %v184
    %436 = vmatprep.subr.mxu0 0.0
    %437 = vmatpush1.msra.mxu0 %v185
    %438 = vmatprep.subr.mxu0 0.0
    %439 = vmatpush1.msra.mxu0 %v186
    %440 = vmatprep.subr.mxu0 0.0
    %441 = vmatpush1.msra.mxu0 %v187
    %442 = vmatprep.subr.mxu0 0.0
    %443 = vmatpush1.msra.mxu0 %v188
    %444 = vmatprep.subr.mxu0 0.0
    %445 = vmatpush1.msra.mxu0 %v189
    %446 = vmatprep.subr.mxu0 0.0
    %447 = vmatpush1.msra.mxu0 %v190
    %448 = vmatprep.subr.mxu0 0.0
    %449 = vmatpush1.msra.mxu0 %v191
    %450 = vmatprep.subr.mxu0 0.0
    %451 = vmatpush1.msra.mxu0 %v192
    %452 = vmatprep.subr.mxu0 0.0
    %453 = vmatpush1.msra.mxu0 %v193
    %454 = vmatprep.subr.mxu0 0.0
    %455 = vmatpush1.msra.mxu0 %v194
    %456 = vmatprep.subr.mxu0 0.0
    %457 = vmatpush1.msra.mxu0 %v195
    %458 = vmatprep.subr.mxu0 0.0
    %459 = vmatpush1.msra.mxu0 %v196
    %460 = vmatprep.subr.mxu0 0.0
    %461 = vmatpush1.msra.mxu0 %v197
    %462 = vmatprep.subr.mxu0 0.0
    %463 = vmatpush1.msra.mxu0 %v198
    %464 = vmatprep.subr.mxu0 0.0
    %465 = vmatpush1.msra.mxu0 %v199
    %466 = vmatprep.subr.mxu0 0.0
    %467 = vmatpush1.msra.mxu0 %v200
    %468 = vmatprep.subr.mxu0 0.0
    %469 = vmatpush1.msra.mxu0 %v201
    %470 = vmatprep.subr.mxu0 0.0
    %471 = vmatpush1.msra.mxu0 %v202
    %472 = vmatprep.subr.mxu0 0.0
    %473 = vmatpush1.msra.mxu0 %v203
    %474 = vmatprep.subr.mxu0 0.0
    %475 = vmatpush1.msra.mxu0 %v204
    %476 = vmatprep.subr.mxu0 0.0
    %477 = vmatpush1.msra.mxu0 %v205
    %478 = vmatprep.subr.mxu0 0.0
    %479 = vmatpush1.msra.mxu0 %v220
    %480 = vmatprep.subr.mxu0 0.0
    %481 = vmatpush1.msra.mxu0 0.0
    %482 = vmatprep.subr.mxu0 0.0
    %483 = vmatpush1.msra.mxu0 0.0
    %484 = vmatprep.subr.mxu0 0.0
    %485 = vmatpush1.msra.mxu0 0.0
    %486 = vmatprep.subr.mxu0 0.0
    %487 = vmatpush1.msra.mxu0 0.0
    %488 = vmatprep.subr.mxu0 0.0
    %489 = vmatpush1.msra.mxu0 0.0
    %490 = vmatprep.subr.mxu0 0.0
    %491 = vmatpush1.msra.mxu0 0.0
    %492 = vmatprep.subr.mxu0 0.0
    %493 = vmatpush1.msra.mxu0 0.0
    %494 = vmatprep.subr.mxu0 0.0
    %495 = vmatpush1.msra.mxu0 0.0
    %496 = vmatprep.mubr.f32.mxu0 %v216
    %497 = vmatmul.mubr.f32.gmra.mrb[0].mxu0 %v85
    %v498 = vpop.f32.mrb[0].mxu0
    %v499 = vadd.f32 %v429, %v498
    %v500 = vpop.f32.mrb[0].mxu0
    %501 = vdwg.mxu0
    %v502 = vmax.f32 %v499, 0.0
    %v503 = vld [vmem:[#allocation6] sm:$0xff]
    %v504 = vld [vmem:[#allocation6 + $0x8] sm:$0xff]
    %v505 = vld [vmem:[#allocation6 + $0x10] sm:$0xff]
    %v506 = vld [vmem:[#allocation6 + $0x18] sm:$0xff]
    %v507 = vld [vmem:[#allocation6 + $0x20] sm:$0xff]
    %v508 = vld [vmem:[#allocation6 + $0x28] sm:$0xff]
    %v509 = vld [vmem:[#allocation6 + $0x30] sm:$0xff]
    %v510 = vld [vmem:[#allocation6 + $0x38] sm:$0xff]
    %v511 = vld [vmem:[#allocation6 + $0x40] sm:$0xff]
    %v512 = vld [vmem:[#allocation6 + $0x48] sm:$0xff]
    %v513 = vld [vmem:[#allocation6 + $0x50] sm:$0xff]
    %v514 = vld [vmem:[#allocation6 + $0x58] sm:$0xff]
    %v515 = vld [vmem:[#allocation6 + $0x60] sm:$0xff]
    %v516 = vld [vmem:[#allocation6 + $0x68] sm:$0xff]
    %v517 = vld [vmem:[#allocation6 + $0x70] sm:$0xff]
    %v518 = vld [vmem:[#allocation6 + $0x78] sm:$0xff]
    %v519 = vld [vmem:[%s4] sm:$0x1]
    %v521 = vlaneseq
    %v522 = vshrl.u32 %v521, 7
    %v523 = vsub.s32 0, %v522
    %v524 = vrot.slane %v519, %v523
    %526 = vmatprep.subr.mxu0 0.0
    %527 = vmatpush1.msra.mxu0 %v503
    %528 = vmatprep.subr.mxu0 0.0
    %529 = vmatpush1.msra.mxu0 %v504
    %530 = vmatprep.subr.mxu0 0.0
    %531 = vmatpush1.msra.mxu0 %v505
    %532 = vmatprep.subr.mxu0 0.0
    %533 = vmatpush1.msra.mxu0 %v506
    %534 = vmatprep.subr.mxu0 0.0
    %535 = vmatpush1.msra.mxu0 %v507
    %536 = vmatprep.subr.mxu0 0.0
    %537 = vmatpush1.msra.mxu0 %v508
    %538 = vmatprep.subr.mxu0 0.0
    %539 = vmatpush1.msra.mxu0 %v509
    %540 = vmatprep.subr.mxu0 0.0
    %541 = vmatpush1.msra.mxu0 %v510
    %542 = vmatprep.subr.mxu0 0.0
    %543 = vmatpush1.msra.mxu0 %v511
    %544 = vmatprep.subr.mxu0 0.0
    %545 = vmatpush1.msra.mxu0 %v512
    %546 = vmatprep.subr.mxu0 0.0
    %547 = vmatpush1.msra.mxu0 %v513
    %548 = vmatprep.subr.mxu0 0.0
    %549 = vmatpush1.msra.mxu0 %v514
    %550 = vmatprep.subr.mxu0 0.0
    %551 = vmatpush1.msra.mxu0 %v515
    %552 = vmatprep.subr.mxu0 0.0
    %553 = vmatpush1.msra.mxu0 %v516
    %554 = vmatprep.subr.mxu0 0.0
    %555 = vmatpush1.msra.mxu0 %v517
    %556 = vmatprep.subr.mxu0 0.0
    %557 = vmatpush1.msra.mxu0 %v518
    %558 = vmatprep.subr.mxu0 0.0
    %559 = vmatpush1.msra.mxu0 0.0
    %560 = vmatprep.subr.mxu0 0.0
    %561 = vmatpush1.msra.mxu0 0.0
    %562 = vmatprep.subr.mxu0 0.0
    %563 = vmatpush1.msra.mxu0 0.0
    %564 = vmatprep.subr.mxu0 0.0
    %565 = vmatpush1.msra.mxu0 0.0
    %566 = vmatprep.subr.mxu0 0.0
    %567 = vmatpush1.msra.mxu0 0.0
    %568 = vmatprep.subr.mxu0 0.0
    %569 = vmatpush1.msra.mxu0 0.0
    %570 = vmatprep.subr.mxu0 0.0
    %571 = vmatpush1.msra.mxu0 0.0
    %572 = vmatprep.subr.mxu0 0.0
    %573 = vmatpush1.msra.mxu0 0.0
    %574 = vmatprep.subr.mxu0 0.0
    %575 = vmatpush1.msra.mxu0 0.0
    %576 = vmatprep.subr.mxu0 0.0
    %577 = vmatpush1.msra.mxu0 0.0
    %578 = vmatprep.subr.mxu0 0.0
    %579 = vmatpush1.msra.mxu0 0.0
    %580 = vmatprep.subr.mxu0 0.0
    %581 = vmatpush1.msra.mxu0 0.0
    %582 = vmatprep.subr.mxu0 0.0
    %583 = vmatpush1.msra.mxu0 0.0
    %584 = vmatprep.subr.mxu0 0.0
    %585 = vmatpush1.msra.mxu0 0.0
    %586 = vmatprep.subr.mxu0 0.0
    %587 = vmatpush1.msra.mxu0 0.0
    %588 = vmatprep.subr.mxu0 0.0
    %589 = vmatpush1.msra.mxu0 0.0
    %590 = vmatprep.mubr.f32.mxu0 0.0
    %591 = vmatmul.mubr.f32.gmra.mrb[0].mxu0 %v502
    %v592 = vpop.f32.mrb[0].mxu0
    %v593 = vadd.f32 %v524, %v592
    %v594 = vpop.f32.mrb[0].mxu0
    %595 = vdwg.mxu0
    %v596 = vmax.f32 %v593, 0.0
    %v597 = vld [vmem:[#allocation7] sm:$0xff]
    %v598 = vld [vmem:[#allocation7 + $0x8] sm:$0xff]
    %v599 = vld [vmem:[#allocation7 + $0x10] sm:$0xff]
    %v600 = vld [vmem:[#allocation7 + $0x18] sm:$0xff]
    %v601 = vld [vmem:[#allocation7 + $0x20] sm:$0xff]
    %v602 = vld [vmem:[#allocation7 + $0x28] sm:$0xff]
    %v603 = vld [vmem:[#allocation7 + $0x30] sm:$0xff]
    %v604 = vld [vmem:[#allocation7 + $0x38] sm:$0xff]
    %v605 = vld [vmem:[#allocation7 + $0x40] sm:$0xff]
    %v606 = vld [vmem:[#allocation7 + $0x48] sm:$0xff]
    %v607 = vld [vmem:[#allocation7 + $0x50] sm:$0xff]
    %v608 = vld [vmem:[#allocation7 + $0x58] sm:$0xff]
    %v609 = vld [vmem:[#allocation7 + $0x60] sm:$0xff]
    %v610 = vld [vmem:[#allocation7 + $0x68] sm:$0xff]
    %v611 = vld [vmem:[#allocation7 + $0x70] sm:$0xff]
    %v612 = vld [vmem:[#allocation7 + $0x78] sm:$0xff]
    %v613 = vld [vmem:[%s6] sm:$0x1]
    %v615 = vlaneseq
    %v616 = vshrl.u32 %v615, 7
    %v617 = vsub.s32 0, %v616
    %v618 = vrot.slane %v613, %v617
    %620 = vmatprep.subr.mxu0 0.0
    %621 = vmatpush1.msra.mxu0 %v597
    %622 = vmatprep.subr.mxu0 0.0
    %623 = vmatpush1.msra.mxu0 %v598
    %624 = vmatprep.subr.mxu0 0.0
    %625 = vmatpush1.msra.mxu0 %v599
    %626 = vmatprep.subr.mxu0 0.0
    %627 = vmatpush1.msra.mxu0 %v600
    %628 = vmatprep.subr.mxu0 0.0
    %629 = vmatpush1.msra.mxu0 %v601
    %630 = vmatprep.subr.mxu0 0.0
    %631 = vmatpush1.msra.mxu0 %v602
    %632 = vmatprep.subr.mxu0 0.0
    %633 = vmatpush1.msra.mxu0 %v603
    %634 = vmatprep.subr.mxu0 0.0
    %635 = vmatpush1.msra.mxu0 %v604
    %636 = vmatprep.subr.mxu0 0.0
    %637 = vmatpush1.msra.mxu0 %v605
    %638 = vmatprep.subr.mxu0 0.0
    %639 = vmatpush1.msra.mxu0 %v606
    %640 = vmatprep.subr.mxu0 0.0
    %641 = vmatpush1.msra.mxu0 %v607
    %642 = vmatprep.subr.mxu0 0.0
    %643 = vmatpush1.msra.mxu0 %v608
    %644 = vmatprep.subr.mxu0 0.0
    %645 = vmatpush1.msra.mxu0 %v609
    %646 = vmatprep.subr.mxu0 0.0
    %647 = vmatpush1.msra.mxu0 %v610
    %648 = vmatprep.subr.mxu0 0.0
    %649 = vmatpush1.msra.mxu0 %v611
    %650 = vmatprep.subr.mxu0 0.0
    %651 = vmatpush1.msra.mxu0 %v612
    %652 = vmatprep.subr.mxu0 0.0
    %653 = vmatpush1.msra.mxu0 0.0
    %654 = vmatprep.subr.mxu0 0.0
    %655 = vmatpush1.msra.mxu0 0.0
    %656 = vmatprep.subr.mxu0 0.0
    %657 = vmatpush1.msra.mxu0 0.0
    %658 = vmatprep.subr.mxu0 0.0
    %659 = vmatpush1.msra.mxu0 0.0
    %660 = vmatprep.subr.mxu0 0.0
    %661 = vmatpush1.msra.mxu0 0.0
    %662 = vmatprep.subr.mxu0 0.0
    %663 = vmatpush1.msra.mxu0 0.0
    %664 = vmatprep.subr.mxu0 0.0
    %665 = vmatpush1.msra.mxu0 0.0
    %666 = vmatprep.subr.mxu0 0.0
    %667 = vmatpush1.msra.mxu0 0.0
    %668 = vmatprep.subr.mxu0 0.0
    %669 = vmatpush1.msra.mxu0 0.0
    %670 = vmatprep.subr.mxu0 0.0
    %671 = vmatpush1.msra.mxu0 0.0
    %672 = vmatprep.subr.mxu0 0.0
    %673 = vmatpush1.msra.mxu0 0.0
    %674 = vmatprep.subr.mxu0 0.0
    %675 = vmatpush1.msra.mxu0 0.0
    %676 = vmatprep.subr.mxu0 0.0
    %677 = vmatpush1.msra.mxu0 0.0
    %678 = vmatprep.subr.mxu0 0.0
    %679 = vmatpush1.msra.mxu0 0.0
    %680 = vmatprep.subr.mxu0 0.0
    %681 = vmatpush1.msra.mxu0 0.0
    %682 = vmatprep.subr.mxu0 0.0
    %683 = vmatpush1.msra.mxu0 0.0
    %684 = vmatprep.mubr.f32.mxu0 0.0
    %685 = vmatmul.mubr.f32.gmra.mrb[0].mxu0 %v596
    %v686 = vpop.f32.mrb[0].mxu0
    %v687 = vadd.f32 %v618, %v686
    %v688 = vpop.f32.mrb[0].mxu0
    %689 = vdwg.mxu0
    %v690 = vxor.u32 %v687, 2147483648
    %v691 = vmul.f32 %v690, 1.442695
    %v692 = vpow.pop %v691
    %v693 = vadd.f32 %v692, 1.0
    %v694 = vrcp.pop %v693
    %v695 = vmul.f32 1.0, %v694
    %vm696 = vcmask 7168
    %697 = vst.msk [vmem:[%s7] sm:$0xff] %vm696, %v695
    // Predicated region
    $region46: #{mlp_forward.1} parent=1 // pred_check
      _
    $region47: #{mlp_forward.1} parent=1 // pred_check_branch
      %699 = sbr.rel (0) target = $region49
    $region48: #{mlp_forward.1} parent=1 // pred_region
      _
    $region49: #{mlp_forward.1} parent=1 // pred_fallthru
      _
    // Predicated region
    $region50: #{mlp_forward.1} parent=1 // pred_check
      _
    $region51: #{mlp_forward.1} parent=1 // pred_check_branch
      %701 = sbr.rel (0) target = $region53
    $region52: #{mlp_forward.1} parent=1 // pred_region
      _
    $region53: #{mlp_forward.1} parent=1 // pred_fallthru
      _
    %702 = vsyncpa [#allocation3], 1
    %703 = vsyncpa [#allocation5], 1
    %704 = vsyncpa [#allocation8], 1

</llo_original>
